<compile_context>
chip_gen: v6e
topology: v6e:2x2x1
jax: 0.10.0
libtpu: 0.0.40
codegen_flags: <defaults>
</compile_context>

<pallas_src>
import functools

import jax
import jax.numpy as jnp
from jax.experimental import pallas as pl
from jax.experimental.pallas import tpu as pltpu


def _sqzex_kernel(x_ref, w1_ref, b1_ref, w2_ref, b2_ref, o_ref, *, inv_hw):
    # x_ref / o_ref: (Nb, C, HW)
    # w1_ref: (C, Cr)  b1_ref: (1, Cr)  w2_ref: (Cr, C)  b2_ref: (1, C)

    # Squeeze: spatial sum accumulated in f32, scaled by the constant 1/HW.
    pooled = jnp.sum(x_ref[...], axis=2, dtype=jnp.float32) * inv_hw      # (Nb, C)

    # Excitation: FC1 -> ReLU6 -> FC2 -> sigmoid (tiny FLOPs; Nb rows batched).
    h = jnp.dot(pooled, w1_ref[...], preferred_element_type=jnp.float32)
    h = jnp.clip(h + b1_ref[...], 0.0, 6.0)                               # ReLU6
    s = jnp.dot(h, w2_ref[...], preferred_element_type=jnp.float32) + b2_ref[...]
    s = jax.nn.sigmoid(s)                                                 # (Nb, C) f32

    # Scale: independent second load of x (no multi-MB value kept live across
    # the reduction).  Gate stays f32; only the product is cast.
    o_ref[...] = (x_ref[...] * s[:, :, None]).astype(o_ref.dtype)


def sqzex_forward(x, w1, b1, w2, b2, *, block_budget_bytes=2 << 20):
    """x: (N, C, H, W).  w1: (C, Cr), b1: (Cr,), w2: (Cr, C), b2: (C,).

    Weights are stored transposed relative to nn.Linear so the kernel computes
    y = pooled @ W + b directly.
    """
    N, C, H, W = x.shape
    Cr = w1.shape[1]
    HW = H * W
    dtype_bytes = jnp.dtype(x.dtype).itemsize
    per_sample_bytes = C * HW * dtype_bytes

    # ---- Block / grid sizing ------------------------------------------------
    # Priorities:
    #   (a) block <= ~block_budget_bytes (1-2 MiB already hits ~85% of HBM
    #       roofline on v6e; bigger only hurts overlap and VMEM),
    #   (b) >= ~TARGET_STEPS grid steps so each v7x TensorCore runs ~4
    #       pipelined steps under dimension_semantics=("parallel",),
    #   (c) a ~512 KiB block floor so awkward / prime N never collapses into
    #       tiny blocks (0.35 us/step overhead, <30% of roofline).
    TARGET_STEPS = 8
    nb_budget = max(1, int(block_budget_bytes) // max(per_sample_bytes, 1))
    nb_floor = max(1, (512 << 10) // max(per_sample_bytes, 1))
    nb_steps = max(1, pl.cdiv(N, TARGET_STEPS))
    nb = min(N, nb_budget, max(nb_steps, nb_floor))
    grid = (pl.cdiv(N, nb),)          # ragged tail: padded rows are discarded

    x_flat = x.reshape(N, C, HW)      # pure reshape, no transpose / HBM pass
    block = (nb, C, HW)               # last two dims = full extent -> valid tile
    kernel = functools.partial(_sqzex_kernel, inv_hw=1.0 / HW)

    b1_2d = b1.reshape(1, Cr)
    b2_2d = b2.reshape(1, C)

    # ---- Cost model (mem-bound: read x + write out, tiny matmuls) -----------
    w_bytes = int((w1.size * jnp.dtype(w1.dtype).itemsize)
                  + (w2.size * jnp.dtype(w2.dtype).itemsize)
                  + (b1.size * jnp.dtype(b1.dtype).itemsize)
                  + (b2.size * jnp.dtype(b2.dtype).itemsize))
    cost = pl.CostEstimate(
        flops=int(N * (2 * C * Cr + 2 * Cr * C) + 2 * N * C * HW),
        transcendentals=int(N * C),
        bytes_accessed=int(2 * N * C * HW * dtype_bytes + w_bytes),
    )

    # ---- Generation-aware VMEM budgeting ------------------------------------
    # Double-buffered input + output blocks, (double-buffered) resident
    # weights, plus ~1 MiB slack for compiler scratch.
    needed_vmem = 4 * nb * per_sample_bytes + 2 * w_bytes + (1 << 20)
    try:
        vmem_cap = int(pltpu.get_tpu_info().vmem_capacity_bytes)
    except Exception:
        vmem_cap = 64 << 20           # assume the most restrictive gen (v7x)
    vmem_cap_limit = (vmem_cap * 3) // 4   # leave headroom for Mosaic scratch

    # v5e's default scoped VMEM limit is 16 MiB (v6e/v7x: 32 MiB).  Raise the
    # limit whenever the working set might not fit the smallest default, but
    # never above ~3/4 of physical VMEM (48 MiB on v7x).
    vmem_limit_bytes = None
    if needed_vmem > (12 << 20):
        vmem_limit_bytes = int(
            min(max(needed_vmem + needed_vmem // 4, 16 << 20), vmem_cap_limit))

    out_flat = pl.pallas_call(
        kernel,
        out_shape=jax.ShapeDtypeStruct(x_flat.shape, x.dtype),
        grid_spec=pltpu.PrefetchScalarGridSpec(
            num_scalar_prefetch=0,
            grid=grid,
            in_specs=[
                pl.BlockSpec(block, lambda n: (n, 0, 0)),    # x (Nb samples/step)
                pl.BlockSpec((C, Cr), lambda n: (0, 0)),     # FC1.weight.T (resident)
                pl.BlockSpec((1, Cr), lambda n: (0, 0)),     # FC1.bias
                pl.BlockSpec((Cr, C), lambda n: (0, 0)),     # FC2.weight.T (resident)
                pl.BlockSpec((1, C), lambda n: (0, 0)),      # FC2.bias
            ],
            out_specs=pl.BlockSpec(block, lambda n: (n, 0, 0)),
        ),
        compiler_params=pltpu.CompilerParams(
            dimension_semantics=("parallel",),
            vmem_limit_bytes=vmem_limit_bytes,
        ),
        cost_estimate=cost,
    )(x_flat, w1, b1_2d, w2, b2_2d)

    return out_flat.reshape(N, C, H, W)


def sqzex_reference(x, w1, b1, w2, b2):
    """Pure-JAX reference mirroring the PyTorch forward."""
    w = jnp.mean(x, axis=(2, 3))                 # (N, C)
    h = jnp.clip(w @ w1 + b1, 0.0, 6.0)          # FC1 + ReLU6
    s = jax.nn.sigmoid(h @ w2 + b2)              # FC2 + sigmoid
    return s[:, :, None, None] * x


if __name__ == "__main__":
    # Small shapes consistent with the module: N=2, C=4, H=W=16, r=1.
    N, C, H, W = 2, 4, 16, 16
    r = 1
    Cr = C // r

    key = jax.random.PRNGKey(0)
    kx, k1, k2, k3, k4 = jax.random.split(key, 5)

    x = jax.random.normal(kx, (N, C, H, W), dtype=jnp.float32)

    # PyTorch nn.Linear-style uniform init; weights stored transposed (in, out).
    bound1 = 1.0 / jnp.sqrt(C)
    w1 = jax.random.uniform(k1, (C, Cr), jnp.float32, -bound1, bound1)   # FC1.weight.T
    b1 = jax.random.uniform(k2, (Cr,), jnp.float32, -bound1, bound1)     # FC1.bias
    bound2 = 1.0 / jnp.sqrt(Cr)
    w2 = jax.random.uniform(k3, (Cr, C), jnp.float32, -bound2, bound2)   # FC2.weight.T
    b2 = jax.random.uniform(k4, (C,), jnp.float32, -bound2, bound2)      # FC2.bias

    out = sqzex_forward(x, w1, b1, w2, b2)
    out = jax.block_until_ready(out)

    ref = sqzex_reference(x, w1, b1, w2, b2)
    assert out.shape == (N, C, H, W)
    assert jnp.allclose(out, ref, atol=1e-5, rtol=1e-5), "mismatch vs reference"

    print("KERNEL_OK")
</pallas_src>

<mosaic_0001>
module attributes {stable_mosaic.version = 11 : i64} {
  func.func @_sqzex_kernel(%arg0: i32, %arg1: memref<2x4x256xf32, #tpu.memory_space<vmem>>, %arg2: memref<4x4xf32, #tpu.memory_space<vmem>>, %arg3: memref<1x4xf32, #tpu.memory_space<vmem>>, %arg4: memref<4x4xf32, #tpu.memory_space<vmem>>, %arg5: memref<1x4xf32, #tpu.memory_space<vmem>>, %arg6: memref<2x4x256xf32, #tpu.memory_space<vmem>>) attributes {dimension_semantics = [#tpu.dimension_semantics<parallel>], iteration_bounds = array<i64: 1>, scalar_prefetch = 0 : i64, scratch_operands = 0 : i64, tpu.core_type = #tpu.core_type<tc>, window_params = [{transform_indices = @transform_0, window_bounds = array<i64: 2, 4, 256>}, {pipeline_mode = #tpu.pipeline_mode<synchronous>, transform_indices = @transform_1, window_bounds = array<i64: 4, 4>}, {pipeline_mode = #tpu.pipeline_mode<synchronous>, transform_indices = @transform_2, window_bounds = array<i64: 1, 4>}, {pipeline_mode = #tpu.pipeline_mode<synchronous>, transform_indices = @transform_3, window_bounds = array<i64: 4, 4>}, {pipeline_mode = #tpu.pipeline_mode<synchronous>, transform_indices = @transform_4, window_bounds = array<i64: 1, 4>}, {transform_indices = @transform_5, window_bounds = array<i64: 2, 4, 256>}]} {
    %c0 = arith.constant 0 : index
    %c0_0 = arith.constant 0 : index
    %c0_1 = arith.constant 0 : index
    %0 = vector.load %arg1[%c0, %c0_0, %c0_1] : memref<2x4x256xf32, #tpu.memory_space<vmem>>, vector<2x4x256xf32>
    %cst = arith.constant dense<0.000000e+00> : vector<2x4xf32>
    %1 = vector.multi_reduction <add>, %0, %cst [2] : vector<2x4x256xf32> to vector<2x4xf32>
    %cst_2 = arith.constant 3.906250e-03 : f32
    %2 = vector.broadcast %cst_2 : f32 to vector<2x4xf32>
    %3 = arith.mulf %1, %2 : vector<2x4xf32>
    %c0_3 = arith.constant 0 : index
    %c0_4 = arith.constant 0 : index
    %4 = vector.load %arg2[%c0_3, %c0_4] : memref<4x4xf32, #tpu.memory_space<vmem>>, vector<4x4xf32>
    %cst_5 = arith.constant dense<0.000000e+00> : vector<2x4xf32>
    %5 = tpu.matmul %3, %4, %cst_5 {dimension_numbers = #tpu.dot_dimension_numbers<[1], [0], [0], [1], [0, 0, 1, 1], [], []>} : vector<2x4xf32>, vector<4x4xf32>, vector<2x4xf32> -> vector<2x4xf32>
    %c0_6 = arith.constant 0 : index
    %c0_7 = arith.constant 0 : index
    %6 = vector.load %arg3[%c0_6, %c0_7] : memref<1x4xf32, #tpu.memory_space<vmem>>, vector<1x4xf32>
    %7 = vector.broadcast %6 : vector<1x4xf32> to vector<2x4xf32>
    %8 = arith.addf %5, %7 : vector<2x4xf32>
    %cst_8 = arith.constant 0.000000e+00 : f32
    %cst_9 = arith.constant 6.000000e+00 : f32
    %9 = vector.broadcast %cst_8 : f32 to vector<2x4xf32>
    %10 = arith.maximumf %9, %8 : vector<2x4xf32>
    %11 = vector.broadcast %cst_9 : f32 to vector<2x4xf32>
    %12 = arith.minimumf %11, %10 : vector<2x4xf32>
    %c0_10 = arith.constant 0 : index
    %c0_11 = arith.constant 0 : index
    %13 = vector.load %arg4[%c0_10, %c0_11] : memref<4x4xf32, #tpu.memory_space<vmem>>, vector<4x4xf32>
    %cst_12 = arith.constant dense<0.000000e+00> : vector<2x4xf32>
    %14 = tpu.matmul %12, %13, %cst_12 {dimension_numbers = #tpu.dot_dimension_numbers<[1], [0], [0], [1], [0, 0, 1, 1], [], []>} : vector<2x4xf32>, vector<4x4xf32>, vector<2x4xf32> -> vector<2x4xf32>
    %c0_13 = arith.constant 0 : index
    %c0_14 = arith.constant 0 : index
    %15 = vector.load %arg5[%c0_13, %c0_14] : memref<1x4xf32, #tpu.memory_space<vmem>>, vector<1x4xf32>
    %16 = vector.broadcast %15 : vector<1x4xf32> to vector<2x4xf32>
    %17 = arith.addf %14, %16 : vector<2x4xf32>
    %18 = arith.negf %17 : vector<2x4xf32>
    %19 = math.exp %18 : vector<2x4xf32>
    %cst_15 = arith.constant 1.000000e+00 : f32
    %20 = vector.broadcast %cst_15 : f32 to vector<2x4xf32>
    %21 = arith.addf %20, %19 : vector<2x4xf32>
    %22 = arith.divf %20, %21 : vector<2x4xf32>
    %c0_16 = arith.constant 0 : index
    %c0_17 = arith.constant 0 : index
    %c0_18 = arith.constant 0 : index
    %23 = vector.load %arg1[%c0_16, %c0_17, %c0_18] : memref<2x4x256xf32, #tpu.memory_space<vmem>>, vector<2x4x256xf32>
    %24 = vector.shape_cast %22 : vector<2x4xf32> to vector<2x4x1xf32>
    %25 = vector.broadcast %24 : vector<2x4x1xf32> to vector<2x4x256xf32>
    %26 = arith.mulf %23, %25 : vector<2x4x256xf32>
    %c0_19 = arith.constant 0 : index
    %c0_20 = arith.constant 0 : index
    %c0_21 = arith.constant 0 : index
    %27 = vector.load %arg6[%c0_19, %c0_20, %c0_21] : memref<2x4x256xf32, #tpu.memory_space<vmem>>, vector<2x4x256xf32>
    tpu.vector_store %arg6[%c0_19, %c0_20, %c0_21], %26 {strides = array<i32>} : memref<2x4x256xf32, #tpu.memory_space<vmem>>, vector<2x4x256xf32>,
    return
  }
  func.func @transform_0(%arg0: i32) -> (i32, i32, i32) {
    %c0_i32 = arith.constant 0 : i32
    %c0_i32_0 = arith.constant 0 : i32
    %c0_i32_1 = arith.constant 0 : i32
    return %arg0, %c0_i32, %c0_i32_0 : i32, i32, i32
  }
  func.func @transform_1(%arg0: i32) -> (i32, i32) {
    %c0_i32 = arith.constant 0 : i32
    %c0_i32_0 = arith.constant 0 : i32
    %c0_i32_1 = arith.constant 0 : i32
    return %c0_i32, %c0_i32_0 : i32, i32
  }
  func.func @transform_2(%arg0: i32) -> (i32, i32) {
    %c0_i32 = arith.constant 0 : i32
    %c0_i32_0 = arith.constant 0 : i32
    %c0_i32_1 = arith.constant 0 : i32
    return %c0_i32, %c0_i32_0 : i32, i32
  }
  func.func @transform_3(%arg0: i32) -> (i32, i32) {
    %c0_i32 = arith.constant 0 : i32
    %c0_i32_0 = arith.constant 0 : i32
    %c0_i32_1 = arith.constant 0 : i32
    return %c0_i32, %c0_i32_0 : i32, i32
  }
  func.func @transform_4(%arg0: i32) -> (i32, i32) {
    %c0_i32 = arith.constant 0 : i32
    %c0_i32_0 = arith.constant 0 : i32
    %c0_i32_1 = arith.constant 0 : i32
    return %c0_i32, %c0_i32_0 : i32, i32
  }
  func.func @transform_5(%arg0: i32) -> (i32, i32, i32) {
    %c0_i32 = arith.constant 0 : i32
    %c0_i32_0 = arith.constant 0 : i32
    %c0_i32_1 = arith.constant 0 : i32
    return %arg0, %c0_i32, %c0_i32_0 : i32, i32, i32
  }
}

</mosaic_0001>

<llo_original>
// kernel: tpu_custom_call.1
$region0: #{tpu_custom_call.1}
  #allocation0 [shape = 'u32[]', space=smem, size = 0x4, offset = 0x4, fixed_abs, tag = 'smem constant byte address 0x4 - core index']
  #allocation1 [shape = 'u32[144,128]{1,0:T(1,128)}', space=vmem, size = 0x12000, scoped, tag = 'internal scratch']
  %s0 = inlined_call_operand.hbm [shape: f32[2,4,256], index: 0, kind: input, shape index: {}]
  %s1 = inlined_call_operand.hbm [shape: f32[4,4], index: 1, kind: input, shape index: {}]
  %s2 = inlined_call_operand.vmem [shape: f32[1,4], index: 2, kind: input, shape index: {}]
  %s3 = inlined_call_operand.vmem [shape: f32[4,4], index: 3, kind: input, shape index: {}]
  %s4 = inlined_call_operand.vmem [shape: f32[1,4], index: 4, kind: input, shape index: {}]
  %s5 = inlined_call_operand.hbm [shape: f32[2,4,256], index: 5, kind: output, shape index: {}]
  %s6 = sld [smem:[#allocation0]]
  $region38: #{tpu_custom_call.1} parent=0
    _
  %s8 = ssub.s32 1, %s6
  %s9 = scalar_select 0, %s8, %s6
  $region1: #{tpu_custom_call.1} parent=0
    #allocation2 [shape = 'u8[8192]{0}', space=vmem, size = 0x2000, scoped, tag = 'input window, operand 0, single buffered']
    #allocation3 [shape = 's32[1]{0}', space=sflag, size = 0x4, scoped, tag = 'scoped memory for tpu_custom_call.1']
    #allocation4 [shape = 's32[1]{0}', space=sflag, size = 0x4, scoped, tag = 'scoped memory for tpu_custom_call.1']
    #allocation5 [shape = 'u8[2048]{0}', space=vmem, size = 0x800, scoped, tag = 'input window, operand 1, single buffered']
    #allocation6 [shape = 's32[1]{0}', space=sflag, size = 0x4, scoped, tag = 'scoped memory for tpu_custom_call.1']
    #allocation7 [shape = 'u8[8192]{0}', space=vmem, size = 0x2000, scoped, tag = 'output window, operand 0, single buffered']
    %10 = vsyncpa [#allocation3], 0
    %11 = vsyncpa [#allocation6], 0
    %12 = vsyncpa [#allocation4], 0
    // Predicated region
    $region2: #{tpu_custom_call.1} parent=1 // pred_check
      _
    $region3: #{tpu_custom_call.1} parent=1 // pred_check_branch
      %14 = sbr.rel (0) target = $region5
    $region4: #{tpu_custom_call.1} parent=1 // pred_region
      %s16 = ssub.s32 256, 256
      %17 = vsyncadd [#allocation3], %s16
      %s18 = sshll.u32 [#allocation2], 4
      %s19 = int_to_ptr.vmem [resolvable:$true] %s18
      %24 = dma.hbm_to_vmem [thread:$0]  %s0, 256, %s19, [#allocation3], 128, 128, 8
    $region5: #{tpu_custom_call.1} parent=1 // pred_fallthru
      _
    // Predicated region
    $region6: #{tpu_custom_call.1} parent=1 // pred_check
      _
    $region7: #{tpu_custom_call.1} parent=1 // pred_check_branch
      %26 = sbr.rel (0) target = $region9
    $region8: #{tpu_custom_call.1} parent=1 // pred_region
      %s28 = ssub.s32 64, 64
      %29 = vsyncadd [#allocation6], %s28
      %s31 = sshll.u32 [#allocation5], 4
      %s32 = int_to_ptr.vmem [resolvable:$true] %s31
      %34 = dma.hbm_to_vmem [thread:$0]  %s1, 64, %s32, [#allocation6]
    $region9: #{tpu_custom_call.1} parent=1 // pred_fallthru
      _
    // Predicated region
    $region10: #{tpu_custom_call.1} parent=1 // pred_check
      _
    $region11: #{tpu_custom_call.1} parent=1 // pred_check_branch
      %36 = sbr.rel (0) target = $region13
    $region12: #{tpu_custom_call.1} parent=1 // pred_region
      _
    $region13: #{tpu_custom_call.1} parent=1 // pred_fallthru
      _
    // Predicated region
    $region14: #{tpu_custom_call.1} parent=1 // pred_check
      _
    $region15: #{tpu_custom_call.1} parent=1 // pred_check_branch
      %38 = sbr.rel (0) target = $region17
    $region16: #{tpu_custom_call.1} parent=1 // pred_region
      _
    $region17: #{tpu_custom_call.1} parent=1 // pred_fallthru
      _
    // Predicated region
    $region18: #{tpu_custom_call.1} parent=1 // pred_check
      _
    $region19: #{tpu_custom_call.1} parent=1 // pred_check_branch
      %40 = sbr.rel (0) target = $region21
    $region20: #{tpu_custom_call.1} parent=1 // pred_region
      _
    $region21: #{tpu_custom_call.1} parent=1 // pred_fallthru
      _
    // Predicated region
    $region22: #{tpu_custom_call.1} parent=1 // pred_check
      _
    $region23: #{tpu_custom_call.1} parent=1 // pred_check_branch
      %42 = sbr.rel (0) target = $region25
    $region24: #{tpu_custom_call.1} parent=1 // pred_region
      %43 = dma.done [#allocation3], 256
    $region25: #{tpu_custom_call.1} parent=1 // pred_fallthru
      _
    // Predicated region
    $region26: #{tpu_custom_call.1} parent=1 // pred_check
      _
    $region27: #{tpu_custom_call.1} parent=1 // pred_check_branch
      %45 = sbr.rel (0) target = $region29
    $region28: #{tpu_custom_call.1} parent=1 // pred_region
      %46 = dma.done [#allocation6], 64
    $region29: #{tpu_custom_call.1} parent=1 // pred_fallthru
      _
    %v47 = vld [vmem:[#allocation2] sm:$0xff]
    %v48 = vld [vmem:[#allocation2 + $0x8] sm:$0xff]
    %v51 = vcombine.high %v47, %v47
    %v52 = vcombine.high %v48, %v48
    %vm55 = vcmask 1043456
    %v56 = vsel %vm55, %v47, 0.0
    %v57 = vsel %vm55, %v51, 0.0
    %v58 = vadd.f32 %v56, %v57
    %59 = vadd.xlane.f32.xlu0 %v58
    %v60 = vpop.xlane.xlu0 %59
    %v61 = vsel %vm55, %v48, 0.0
    %v62 = vsel %vm55, %v52, 0.0
    %v63 = vadd.f32 %v61, %v62
    %64 = vadd.xlane.f32.xlu0 %v63
    %v65 = vpop.xlane.xlu0 %64
    %v66 = vmul.f32 %v60, 0.00390625
    %v67 = vmul.f32 %v65, 0.00390625
    %v68 = vld [vmem:[#allocation5] sm:$0xf]
    %v69 = vld [vmem:[%s2] sm:$0x1]
    %v71 = vlaneseq
    %v72 = vshrl.u32 %v71, 7
    %v73 = vsub.s32 0, %v72
    %v74 = vrot.slane %v69, %v73
    %v78 = vlaneseq
    %v79 = vand.u32 %v78, 127
    %v80 = vlaneseq
    %v81 = vshrl.u32 %v80, 7
    %v82 = vsub.s32 %v79, %v81
    %v83 = vrot.slane %v66, %v82
    %v84 = vlaneseq
    %v85 = vshrl.u32 %v84, 7
    %v86 = vsub.s32 %v79, %v85
    %v87 = vrot.slane %v67, %v86
    %vm88 = vcmask 1041409
    %v89 = vsel %vm88, %v87, %v83
    %vm90 = vcmask 31744
    %v91 = vsel %vm90, %v89, 0
    %v94 = vsel %vm55, %v68, 0
    %96 = vmatprep.subr.mxu0 0.0
    %97 = vmatpush1.msra.mxu0 0.0
    %98 = vmatprep.subr.mxu0 0.0
    %99 = vmatpush1.msra.mxu0 0.0
    %100 = vmatprep.subr.mxu0 0.0
    %101 = vmatpush1.msra.mxu0 0.0
    %102 = vmatprep.subr.mxu0 0.0
    %103 = vmatpush1.msra.mxu0 0.0
    %104 = vmatprep.subr.mxu0 0.0
    %105 = vmatpush1.msra.mxu0 0.0
    %106 = vmatprep.subr.mxu0 0.0
    %107 = vmatpush1.msra.mxu0 0.0
    %108 = vmatprep.subr.mxu0 0.0
    %109 = vmatpush1.msra.mxu0 0.0
    %110 = vmatprep.subr.mxu0 0.0
    %111 = vmatpush1.msra.mxu0 0.0
    %112 = vmatprep.subr.mxu0 0.0
    %113 = vmatpush1.msra.mxu0 0.0
    %114 = vmatprep.subr.mxu0 0.0
    %115 = vmatpush1.msra.mxu0 0.0
    %116 = vmatprep.subr.mxu0 0.0
    %117 = vmatpush1.msra.mxu0 0.0
    %118 = vmatprep.subr.mxu0 0.0
    %119 = vmatpush1.msra.mxu0 0.0
    %120 = vmatprep.subr.mxu0 0.0
    %121 = vmatpush1.msra.mxu0 0.0
    %122 = vmatprep.subr.mxu0 0.0
    %123 = vmatpush1.msra.mxu0 0.0
    %124 = vmatprep.subr.mxu0 0.0
    %125 = vmatpush1.msra.mxu0 0.0
    %126 = vmatprep.subr.mxu0 0.0
    %127 = vmatpush1.msra.mxu0 %v94
    %128 = vmatprep.subr.mxu0 0.0
    %129 = vmatpush2.msra.mxu0 0.0
    %130 = vmatprep.subr.mxu0 0.0
    %131 = vmatpush2.msra.mxu0 0.0
    %132 = vmatprep.subr.mxu0 0.0
    %133 = vmatpush2.msra.mxu0 0.0
    %134 = vmatprep.subr.mxu0 0.0
    %135 = vmatpush2.msra.mxu0 0.0
    %136 = vmatprep.subr.mxu0 0.0
    %137 = vmatpush2.msra.mxu0 0.0
    %138 = vmatprep.subr.mxu0 0.0
    %139 = vmatpush2.msra.mxu0 0.0
    %140 = vmatprep.subr.mxu0 0.0
    %141 = vmatpush2.msra.mxu0 0.0
    %142 = vmatprep.subr.mxu0 0.0
    %143 = vmatpush2.msra.mxu0 0.0
    %144 = vmatprep.subr.mxu0 0.0
    %145 = vmatpush2.msra.mxu0 0.0
    %146 = vmatprep.subr.mxu0 0.0
    %147 = vmatpush2.msra.mxu0 0.0
    %148 = vmatprep.subr.mxu0 0.0
    %149 = vmatpush2.msra.mxu0 0.0
    %150 = vmatprep.subr.mxu0 0.0
    %151 = vmatpush2.msra.mxu0 0.0
    %152 = vmatprep.subr.mxu0 0.0
    %153 = vmatpush2.msra.mxu0 0.0
    %154 = vmatprep.subr.mxu0 0.0
    %155 = vmatpush2.msra.mxu0 0.0
    %156 = vmatprep.subr.mxu0 0.0
    %157 = vmatpush2.msra.mxu0 0.0
    %158 = vmatprep.subr.mxu0 0.0
    %159 = vmatpush2.msra.mxu0 0.0
    %160 = vmatprep.mubr.f32.mxu0 0.0
    %161 = vmatmul.mubr.f32.gmra.mxu0 %v91
    %v162 = vpop.f32.mrf.mxu0
    %v163 = vadd.f32 %v74, %v162
    %v164 = vpop.f32.mrf.mxu0
    %165 = vdwg.mxu0
    %v166 = vmax.f32 %v163, 0.0
    %v167 = vmin.f32 %v166, 6.0
    %v168 = vld [vmem:[%s3] sm:$0xf]
    %v169 = vld [vmem:[%s4] sm:$0x1]
    %v171 = vlaneseq
    %v172 = vshrl.u32 %v171, 7
    %v173 = vsub.s32 0, %v172
    %v174 = vrot.slane %v169, %v173
    %v177 = vsel %vm90, %v167, 0
    %v180 = vsel %vm55, %v168, 0
    %182 = vmatprep.subr.mxu0 0.0
    %183 = vmatpush1.msra.mxu0 0.0
    %184 = vmatprep.subr.mxu0 0.0
    %185 = vmatpush1.msra.mxu0 0.0
    %186 = vmatprep.subr.mxu0 0.0
    %187 = vmatpush1.msra.mxu0 0.0
    %188 = vmatprep.subr.mxu0 0.0
    %189 = vmatpush1.msra.mxu0 0.0
    %190 = vmatprep.subr.mxu0 0.0
    %191 = vmatpush1.msra.mxu0 0.0
    %192 = vmatprep.subr.mxu0 0.0
    %193 = vmatpush1.msra.mxu0 0.0
    %194 = vmatprep.subr.mxu0 0.0
    %195 = vmatpush1.msra.mxu0 0.0
    %196 = vmatprep.subr.mxu0 0.0
    %197 = vmatpush1.msra.mxu0 0.0
    %198 = vmatprep.subr.mxu0 0.0
    %199 = vmatpush1.msra.mxu0 0.0
    %200 = vmatprep.subr.mxu0 0.0
    %201 = vmatpush1.msra.mxu0 0.0
    %202 = vmatprep.subr.mxu0 0.0
    %203 = vmatpush1.msra.mxu0 0.0
    %204 = vmatprep.subr.mxu0 0.0
    %205 = vmatpush1.msra.mxu0 0.0
    %206 = vmatprep.subr.mxu0 0.0
    %207 = vmatpush1.msra.mxu0 0.0
    %208 = vmatprep.subr.mxu0 0.0
    %209 = vmatpush1.msra.mxu0 0.0
    %210 = vmatprep.subr.mxu0 0.0
    %211 = vmatpush1.msra.mxu0 0.0
    %212 = vmatprep.subr.mxu0 0.0
    %213 = vmatpush1.msra.mxu0 %v180
    %214 = vmatprep.subr.mxu0 0.0
    %215 = vmatpush2.msra.mxu0 0.0
    %216 = vmatprep.subr.mxu0 0.0
    %217 = vmatpush2.msra.mxu0 0.0
    %218 = vmatprep.subr.mxu0 0.0
    %219 = vmatpush2.msra.mxu0 0.0
    %220 = vmatprep.subr.mxu0 0.0
    %221 = vmatpush2.msra.mxu0 0.0
    %222 = vmatprep.subr.mxu0 0.0
    %223 = vmatpush2.msra.mxu0 0.0
    %224 = vmatprep.subr.mxu0 0.0
    %225 = vmatpush2.msra.mxu0 0.0
    %226 = vmatprep.subr.mxu0 0.0
    %227 = vmatpush2.msra.mxu0 0.0
    %228 = vmatprep.subr.mxu0 0.0
    %229 = vmatpush2.msra.mxu0 0.0
    %230 = vmatprep.subr.mxu0 0.0
    %231 = vmatpush2.msra.mxu0 0.0
    %232 = vmatprep.subr.mxu0 0.0
    %233 = vmatpush2.msra.mxu0 0.0
    %234 = vmatprep.subr.mxu0 0.0
    %235 = vmatpush2.msra.mxu0 0.0
    %236 = vmatprep.subr.mxu0 0.0
    %237 = vmatpush2.msra.mxu0 0.0
    %238 = vmatprep.subr.mxu0 0.0
    %239 = vmatpush2.msra.mxu0 0.0
    %240 = vmatprep.subr.mxu0 0.0
    %241 = vmatpush2.msra.mxu0 0.0
    %242 = vmatprep.subr.mxu0 0.0
    %243 = vmatpush2.msra.mxu0 0.0
    %244 = vmatprep.subr.mxu0 0.0
    %245 = vmatpush2.msra.mxu0 0.0
    %246 = vmatprep.mubr.f32.mxu0 0.0
    %247 = vmatmul.mubr.f32.gmra.mxu0 %v177
    %v248 = vpop.f32.mrf.mxu0
    %v249 = vadd.f32 %v174, %v248
    %v250 = vpop.f32.mrf.mxu0
    %251 = vdwg.mxu0
    %v252 = vxor.u32 %v249, 2147483648
    %v253 = vmul.f32 %v252, 1.442695
    %v254 = vpow.pop %v253
    %v255 = vadd.f32 %v254, 1.0
    %v256 = vrcp.pop %v255
    %v257 = vmul.f32 1.0, %v256
    %v258 = vlaneseq
    %v259 = vshrl.u32 %v258, 7
    %v260 = vsub.s32 0, %v259
    %v261 = vrot.slane %v257, %v260
    %263 = vbcast.lane.b32.xlu0 %v261, 256
    %v264 = vpop.permute.xlu0 %263
    %v265 = vlaneseq
    %v266 = vshrl.u32 %v265, 7
    %v267 = vsub.s32 1, %v266
    %v268 = vrot.slane %v257, %v267
    %270 = vbcast.lane.b32.xlu0 %v268, 256
    %v271 = vpop.permute.xlu0 %270
    %v275 = vunpack.c.l.s4 839922192
    %v276 = vunpack.c.0.s8 %v275
    %v277 = vlaneseq
    %v278 = vshrl.u32 %v277, 7
    %v279 = vsub.s32 %v276, %v278
    %v280 = vrot.slane %v264, %v279
    %v282 = vunpack.c.l.s4 839922192
    %v283 = vunpack.c.0.s8 %v282
    %v284 = vlaneseq
    %v285 = vshrl.u32 %v284, 7
    %v286 = vsub.s32 %v283, %v285
    %v287 = vrot.slane %v271, %v286
    %v290 = vmul.f32 %v47, %v280
    %v291 = vmul.f32 %v48, %v287
    %292 = vst [vmem:[#allocation7] sm:$0xff] %v290
    %293 = vst [vmem:[#allocation7 + $0x8] sm:$0xff] %v291
    // Predicated region
    $region30: #{tpu_custom_call.1} parent=1 // pred_check
      _
    $region31: #{tpu_custom_call.1} parent=1 // pred_check_branch
      %295 = sbr.rel (0) target = $region33
    $region32: #{tpu_custom_call.1} parent=1 // pred_region
      %s297 = ssub.s32 256, 256
      %298 = vsyncadd [#allocation4], %s297
      %s299 = sshll.u32 [#allocation7], 4
      %s300 = int_to_ptr.vmem [resolvable:$true] %s299
      %305 = dma.vmem_to_hbm [thread:$0]  %s300, 256, %s5, [#allocation4], 128, 128, 8
    $region33: #{tpu_custom_call.1} parent=1 // pred_fallthru
      _
    // Predicated region
    $region34: #{tpu_custom_call.1} parent=1 // pred_check
      _
    $region35: #{tpu_custom_call.1} parent=1 // pred_check_branch
      %307 = sbr.rel (0) target = $region37
    $region36: #{tpu_custom_call.1} parent=1 // pred_region
      %308 = dma.done [#allocation4], 256
    $region37: #{tpu_custom_call.1} parent=1 // pred_fallthru
      _
    %309 = vsyncpa [#allocation3], 1
    %310 = vsyncpa [#allocation6], 1
    %311 = vsyncpa [#allocation4], 1

</llo_original>
